<compile_context>
chip_gen: v5e
topology: v5e:2x2
jax: 0.10.0
libtpu: 0.0.40
codegen_flags: <defaults>
</compile_context>

<pallas_src>
import math

import jax
import jax.numpy as jnp
from jax.experimental import pallas as pl
from jax.experimental.pallas import tpu as pltpu


def _genet_kernel(eps_ref, w1_ref, b1_ref, w2_ref, b2_ref, y_ref):
    """One row-tile: y[:, tile] = W2 @ relu(W1 @ eps[:, tile] + b1) + b2."""
    # hidden = ReLU(W1 @ eps + b1)        -> (nb_neur, tile_n), lane-dense
    h = jnp.dot(w1_ref[...], eps_ref[...], preferred_element_type=jnp.float32)
    h = jnp.maximum(h + b1_ref[...], 0.0)

    # out = W2 @ hidden + b2              -> (output_dim, tile_n), lane-dense
    o = jnp.dot(w2_ref[...], h, preferred_element_type=jnp.float32)
    y_ref[...] = (o + b2_ref[...]).astype(y_ref.dtype)


def genet_forward(key, w1, b1, w2, b2, n, *, tile_n=4096, return_eps=False):
    """GeNet.forward(n): eps ~ N(0, I) then the 2-layer MLP, fused in Pallas.

    The sample dimension n is the lane dimension throughout.  n is padded up
    to a multiple of tile_n; the padded columns are computed and dropped (for
    large n pick tile_n so it divides n, or consume the (output_dim, n_pad)
    kernel output directly to avoid the final transpose+slice).
    """
    nb_neur, lat_dim = w1.shape
    output_dim = w2.shape[0]

    # tile_n must be a lane multiple; clamp so tiny n doesn't over-pad.
    n_lane = int(pl.cdiv(n, 128)) * 128
    tile_n = max(128, min(int(tile_n), n_lane))
    assert tile_n % 128 == 0, "tile_n must be a multiple of 128"
    num_tiles = int(pl.cdiv(n, tile_n))
    n_pad = num_tiles * tile_n

    # eps drawn in the wrapper (statistically identical to torch.randn), laid
    # out (lat_dim, n_pad) so the kernel never touches a lane-sparse array.
    eps = jax.random.normal(key, (lat_dim, n_pad), dtype=jnp.float32)

    grid_spec = pltpu.PrefetchScalarGridSpec(
        num_scalar_prefetch=0,
        grid=(num_tiles,),
        in_specs=[
            pl.BlockSpec((lat_dim, tile_n), lambda i: (0, i)),      # eps tile
            pl.BlockSpec((nb_neur, lat_dim), lambda i: (0, 0)),     # W1 (resident)
            pl.BlockSpec((nb_neur, 1), lambda i: (0, 0)),           # b1 (resident)
            pl.BlockSpec((output_dim, nb_neur), lambda i: (0, 0)),  # W2 (resident)
            pl.BlockSpec((output_dim, 1), lambda i: (0, 0)),        # b2 (resident)
        ],
        out_specs=pl.BlockSpec((output_dim, tile_n), lambda i: (0, i)),
    )

    y_t = pl.pallas_call(
        _genet_kernel,
        out_shape=jax.ShapeDtypeStruct((output_dim, n_pad), jnp.float32),
        grid_spec=grid_spec,
        compiler_params=pltpu.CompilerParams(
            # Independent row tiles -> shard across both TensorCores on v7x.
            dimension_semantics=("parallel",)),
    )(eps, w1, b1, w2, b2)

    y = y_t.T[:n]                       # (n, output_dim), PyTorch convention
    if return_eps:
        return y, eps                   # eps already lives in HBM; free to return
    return y


def init_genet_params(key, lat_dim, nb_neur, output_dim, init_w, init_b):
    """Parameter init mirroring the PyTorch module, in (out, in) layout.

    Layer 1: nn.Linear default init, U(-1/sqrt(fan_in), 1/sqrt(fan_in)).
    Layer 2: weight ~ N(0, init_w^2), bias ~ N(0, init_b^2) (GeNet.__init__).
    """
    k1, k2, k3, k4 = jax.random.split(key, 4)
    bound1 = 1.0 / math.sqrt(lat_dim)
    w1 = jax.random.uniform(k1, (nb_neur, lat_dim), jnp.float32,
                            minval=-bound1, maxval=bound1)
    b1 = jax.random.uniform(k2, (nb_neur, 1), jnp.float32,
                            minval=-bound1, maxval=bound1)
    w2 = init_w * jax.random.normal(k3, (output_dim, nb_neur), jnp.float32)
    b2 = init_b * jax.random.normal(k4, (output_dim, 1), jnp.float32)
    return w1, b1, w2, b2


if __name__ == "__main__":
    # Module-consistent small shapes; n chosen so the row-tiled grid runs
    # 2 steps (tile_n=1024 -> n_pad=2048) and exercises the ragged-n path.
    lat_dim = 8
    nb_neur = 32
    output_dim = 16
    n = 2000
    init_w = 0.1
    init_b = 0.01

    key = jax.random.PRNGKey(0)
    pkey, ekey = jax.random.split(key)
    w1, b1, w2, b2 = init_genet_params(
        pkey, lat_dim, nb_neur, output_dim, init_w, init_b)

    y, eps = genet_forward(ekey, w1, b1, w2, b2, n, tile_n=1024,
                           return_eps=True)
    y = jax.block_until_ready(y)

    assert y.shape == (n, output_dim)
    assert bool(jnp.all(jnp.isfinite(y)))

    # Pure-JAX reference on the same eps (transposed layout).
    h_ref = jnp.maximum(w1 @ eps + b1, 0.0)
    y_ref = (w2 @ h_ref + b2).T[:n]
    assert jnp.allclose(y, y_ref, atol=1e-5, rtol=1e-5), \
        float(jnp.max(jnp.abs(y - y_ref)))

    # Loose distributional sanity check on the samples.
    assert abs(float(jnp.mean(eps))) < 0.1
    assert abs(float(jnp.std(eps)) - 1.0) < 0.1

    # Production path (same key -> same samples -> same output).
    y2 = jax.block_until_ready(
        genet_forward(ekey, w1, b1, w2, b2, n, tile_n=1024))
    assert y2.shape == (n, output_dim)
    assert jnp.allclose(y2, y, atol=1e-6, rtol=1e-6)

    print("KERNEL_OK")
</pallas_src>

<mosaic_0001>
module attributes {stable_mosaic.version = 11 : i64} {
  func.func @_genet_kernel(%arg0: i32, %arg1: memref<8x1024xf32, #tpu.memory_space<vmem>>, %arg2: memref<32x8xf32, #tpu.memory_space<vmem>>, %arg3: memref<32x1xf32, #tpu.memory_space<vmem>>, %arg4: memref<16x32xf32, #tpu.memory_space<vmem>>, %arg5: memref<16x1xf32, #tpu.memory_space<vmem>>, %arg6: memref<16x1024xf32, #tpu.memory_space<vmem>>) attributes {dimension_semantics = [#tpu.dimension_semantics<parallel>], iteration_bounds = array<i64: 2>, scalar_prefetch = 0 : i64, scratch_operands = 0 : i64, tpu.core_type = #tpu.core_type<tc>, window_params = [{transform_indices = @transform_0, window_bounds = array<i64: 8, 1024>}, {pipeline_mode = #tpu.pipeline_mode<synchronous>, transform_indices = @transform_1, window_bounds = array<i64: 32, 8>}, {pipeline_mode = #tpu.pipeline_mode<synchronous>, transform_indices = @transform_2, window_bounds = array<i64: 32, 1>}, {pipeline_mode = #tpu.pipeline_mode<synchronous>, transform_indices = @transform_3, window_bounds = array<i64: 16, 32>}, {pipeline_mode = #tpu.pipeline_mode<synchronous>, transform_indices = @transform_4, window_bounds = array<i64: 16, 1>}, {transform_indices = @transform_5, window_bounds = array<i64: 16, 1024>}]} {
    %c0 = arith.constant 0 : index
    %c0_0 = arith.constant 0 : index
    %0 = vector.load %arg2[%c0, %c0_0] : memref<32x8xf32, #tpu.memory_space<vmem>>, vector<32x8xf32>
    %c0_1 = arith.constant 0 : index
    %c0_2 = arith.constant 0 : index
    %1 = vector.load %arg1[%c0_1, %c0_2] : memref<8x1024xf32, #tpu.memory_space<vmem>>, vector<8x1024xf32>
    %cst = arith.constant dense<0.000000e+00> : vector<32x1024xf32>
    %2 = tpu.matmul %0, %1, %cst {dimension_numbers = #tpu.dot_dimension_numbers<[1], [0], [0], [1], [0, 0, 1, 1], [], []>} : vector<32x8xf32>, vector<8x1024xf32>, vector<32x1024xf32> -> vector<32x1024xf32>
    %c0_3 = arith.constant 0 : index
    %c0_4 = arith.constant 0 : index
    %3 = vector.load %arg3[%c0_3, %c0_4] : memref<32x1xf32, #tpu.memory_space<vmem>>, vector<32x1xf32>
    %4 = vector.broadcast %3 : vector<32x1xf32> to vector<32x1024xf32>
    %5 = arith.addf %2, %4 : vector<32x1024xf32>
    %cst_5 = arith.constant 0.000000e+00 : f32
    %6 = vector.broadcast %cst_5 : f32 to vector<32x1024xf32>
    %7 = arith.maximumf %5, %6 : vector<32x1024xf32>
    %c0_6 = arith.constant 0 : index
    %c0_7 = arith.constant 0 : index
    %8 = vector.load %arg4[%c0_6, %c0_7] : memref<16x32xf32, #tpu.memory_space<vmem>>, vector<16x32xf32>
    %cst_8 = arith.constant dense<0.000000e+00> : vector<16x1024xf32>
    %9 = tpu.matmul %8, %7, %cst_8 {dimension_numbers = #tpu.dot_dimension_numbers<[1], [0], [0], [1], [0, 0, 1, 1], [], []>} : vector<16x32xf32>, vector<32x1024xf32>, vector<16x1024xf32> -> vector<16x1024xf32>
    %c0_9 = arith.constant 0 : index
    %c0_10 = arith.constant 0 : index
    %10 = vector.load %arg5[%c0_9, %c0_10] : memref<16x1xf32, #tpu.memory_space<vmem>>, vector<16x1xf32>
    %11 = vector.broadcast %10 : vector<16x1xf32> to vector<16x1024xf32>
    %12 = arith.addf %9, %11 : vector<16x1024xf32>
    %c0_11 = arith.constant 0 : index
    %c0_12 = arith.constant 0 : index
    %13 = vector.load %arg6[%c0_11, %c0_12] : memref<16x1024xf32, #tpu.memory_space<vmem>>, vector<16x1024xf32>
    tpu.vector_store %arg6[%c0_11, %c0_12], %12 {strides = array<i32>} : memref<16x1024xf32, #tpu.memory_space<vmem>>, vector<16x1024xf32>,
    return
  }
  func.func @transform_0(%arg0: i32) -> (i32, i32) {
    %c0_i32 = arith.constant 0 : i32
    %c0_i32_0 = arith.constant 0 : i32
    return %c0_i32, %arg0 : i32, i32
  }
  func.func @transform_1(%arg0: i32) -> (i32, i32) {
    %c0_i32 = arith.constant 0 : i32
    %c0_i32_0 = arith.constant 0 : i32
    %c0_i32_1 = arith.constant 0 : i32
    return %c0_i32, %c0_i32_0 : i32, i32
  }
  func.func @transform_2(%arg0: i32) -> (i32, i32) {
    %c0_i32 = arith.constant 0 : i32
    %c0_i32_0 = arith.constant 0 : i32
    %c0_i32_1 = arith.constant 0 : i32
    return %c0_i32, %c0_i32_0 : i32, i32
  }
  func.func @transform_3(%arg0: i32) -> (i32, i32) {
    %c0_i32 = arith.constant 0 : i32
    %c0_i32_0 = arith.constant 0 : i32
    %c0_i32_1 = arith.constant 0 : i32
    return %c0_i32, %c0_i32_0 : i32, i32
  }
  func.func @transform_4(%arg0: i32) -> (i32, i32) {
    %c0_i32 = arith.constant 0 : i32
    %c0_i32_0 = arith.constant 0 : i32
    %c0_i32_1 = arith.constant 0 : i32
    return %c0_i32, %c0_i32_0 : i32, i32
  }
  func.func @transform_5(%arg0: i32) -> (i32, i32) {
    %c0_i32 = arith.constant 0 : i32
    %c0_i32_0 = arith.constant 0 : i32
    return %c0_i32, %arg0 : i32, i32
  }
}

</mosaic_0001>

<llo_original>
// kernel: tpu_custom_call.1
$region0: #{tpu_custom_call.1}
  #allocation0 [shape = 'u32[]', space=smem, size = 0x4, offset = 0x4, fixed_abs, tag = 'smem constant byte address 0x4 - core index']
  #allocation1 [shape = 'u32[72,128]{1,0:T(1,128)}', space=vmem, size = 0x9000, scoped, tag = 'internal scratch']
  %s0 = inlined_call_operand.hbm [shape: f32[8,2048], index: 0, kind: input, shape index: {}]
  %s1 = inlined_call_operand.vmem [shape: f32[32,8], index: 1, kind: input, shape index: {}]
  %s2 = inlined_call_operand.vmem [shape: f32[32,1], index: 2, kind: input, shape index: {}]
  %s3 = inlined_call_operand.vmem [shape: f32[16,32], index: 3, kind: input, shape index: {}]
  %s4 = inlined_call_operand.vmem [shape: f32[16,1], index: 4, kind: input, shape index: {}]
  %s5 = inlined_call_operand.hbm [shape: f32[16,2048], index: 5, kind: output, shape index: {}]
  %s6 = sld [smem:[#allocation0]]
  $region57: #{tpu_custom_call.1} parent=0
    _
  %s8 = ssub.s32 1, %s6
  %s9 = scalar_select 0, %s8, %s6
  $region1: #{tpu_custom_call.1} parent=0
    #allocation2 [shape = 'u8[65536]{0}', space=vmem, size = 0x10000, scoped, tag = 'input window, operand 0']
    #allocation3 [shape = 's32[2]{0}', space=sflag, size = 0x8, scoped, tag = 'scoped memory for tpu_custom_call.1']
    #allocation4 [shape = 's32[2]{0}', space=sflag, size = 0x8, scoped, tag = 'scoped memory for tpu_custom_call.1']
    #allocation5 [shape = 'u8[131072]{0}', space=vmem, size = 0x20000, scoped, tag = 'output window, operand 0']
    %10 = vsyncpa [#allocation3], 0
    %s11 = scalar_lea.sflag [#allocation3], 1
    %12 = vsyncpa %s11, 0
    %13 = vsyncpa [#allocation4], 0
    %s14 = scalar_lea.sflag [#allocation4], 1
    %15 = vsyncpa %s14, 0
    loop: start=0, step=1, limit=4
    $region2: #{tpu_custom_call.1} parent=1 // loop_pre_header
      _
    $region3: #{tpu_custom_call.1} parent=1 // loop_header
      %s17 = sphi 0, %s21
      %p18 = scmp.ge.s32.totalorder %s17, 4
      %s27 = sphi 0, %s29
      %s30 = sphi 0, %s27
      %s31 = sphi 0, %s30
      %s47 = sphi 0, %s31
      %s51 = sphi 0, %s51
      %s53 = sphi 0, %s51
      %s54 = sphi 0, %s53
      %s68 = sphi 0, %s54
      %s72 = sphi 0, %s72
      %s74 = sphi 0, %s72
      %s75 = sphi 0, %s74
      %s89 = sphi 0, %s75
      %s93 = sphi 0, %s93
      %s95 = sphi 0, %s93
      %s96 = sphi 0, %s95
      %s110 = sphi 0, %s96
      %s114 = sphi 0, %s114
      %s116 = sphi 0, %s114
      %s117 = sphi 0, %s116
      %s131 = sphi 0, %s117
      %s137 = sphi 0, %s139
      %s140 = sphi 0, %s137
      %s141 = sphi 0, %s140
      %s157 = sphi 0, %s141
    $region4: #{tpu_custom_call.1} parent=1 // loop_header_branch
      %20 = sbr.rel (%p18) target = $region8
    $region5: #{tpu_custom_call.1} parent=1 // loop_body
      %s22 = ssub.s32 %s17, 1
      %s23 = ssub.s32 %s17, 2
      %s24 = sadd.s32 %s17, 1
      %s25 = ssub.s32 %s17, %s24
      %p26 = scmp.eq.s32.totalorder %s25, 0
      %s28 = sadd.s32 %s27, 1
      %s29 = scalar_select %p26, %s27, %s28
      %p32 = pneg %p26
      %p33 = scmp.eq.s32.totalorder %s17, 1
      %p34 = por %p32, %p33
      %p35 = scmp.ne.s32.totalorder %s27, %s30
      %p36 = scmp.eq.s32.totalorder %s17, 0
      %p37 = por %p35, %p36
      %p38 = scmp.ne.s32.totalorder %s27, %s30
      %p39 = scmp.eq.s32.totalorder %s22, 1
      %p40 = por %p38, %p39
      %p41 = scmp.ne.s32.totalorder %s30, %s31
      %p42 = scmp.eq.s32.totalorder %s22, 0
      %p43 = por %p41, %p42
      %p44 = scmp.ne.s32.totalorder %s30, %s31
      %p45 = scmp.eq.s32.totalorder %s23, 1
      %p46 = por %p44, %p45
      %p48 = scmp.ne.s32.totalorder %s31, %s47
      %p49 = scmp.eq.s32.totalorder %s23, 0
      %p50 = por %p48, %p49
      %s52 = sadd.s32 %s51, 1
      %p55 = scmp.eq.s32.totalorder %s17, 1
      %p56 = scmp.ne.s32.totalorder %s51, %s53
      %p57 = scmp.eq.s32.totalorder %s17, 0
      %p58 = por %p56, %p57
      %p59 = scmp.ne.s32.totalorder %s51, %s53
      %p60 = scmp.eq.s32.totalorder %s22, 1
      %p61 = por %p59, %p60
      %p62 = scmp.ne.s32.totalorder %s53, %s54
      %p63 = scmp.eq.s32.totalorder %s22, 0
      %p64 = por %p62, %p63
      %p65 = scmp.ne.s32.totalorder %s53, %s54
      %p66 = scmp.eq.s32.totalorder %s23, 1
      %p67 = por %p65, %p66
      %p69 = scmp.ne.s32.totalorder %s54, %s68
      %p70 = scmp.eq.s32.totalorder %s23, 0
      %p71 = por %p69, %p70
      %s73 = sadd.s32 %s72, 1
      %p76 = scmp.eq.s32.totalorder %s17, 1
      %p77 = scmp.ne.s32.totalorder %s72, %s74
      %p78 = scmp.eq.s32.totalorder %s17, 0
      %p79 = por %p77, %p78
      %p80 = scmp.ne.s32.totalorder %s72, %s74
      %p81 = scmp.eq.s32.totalorder %s22, 1
      %p82 = por %p80, %p81
      %p83 = scmp.ne.s32.totalorder %s74, %s75
      %p84 = scmp.eq.s32.totalorder %s22, 0
      %p85 = por %p83, %p84
      %p86 = scmp.ne.s32.totalorder %s74, %s75
      %p87 = scmp.eq.s32.totalorder %s23, 1
      %p88 = por %p86, %p87
      %p90 = scmp.ne.s32.totalorder %s75, %s89
      %p91 = scmp.eq.s32.totalorder %s23, 0
      %p92 = por %p90, %p91
      %s94 = sadd.s32 %s93, 1
      %p97 = scmp.eq.s32.totalorder %s17, 1
      %p98 = scmp.ne.s32.totalorder %s93, %s95
      %p99 = scmp.eq.s32.totalorder %s17, 0
      %p100 = por %p98, %p99
      %p101 = scmp.ne.s32.totalorder %s93, %s95
      %p102 = scmp.eq.s32.totalorder %s22, 1
      %p103 = por %p101, %p102
      %p104 = scmp.ne.s32.totalorder %s95, %s96
      %p105 = scmp.eq.s32.totalorder %s22, 0
      %p106 = por %p104, %p105
      %p107 = scmp.ne.s32.totalorder %s95, %s96
      %p108 = scmp.eq.s32.totalorder %s23, 1
      %p109 = por %p107, %p108
      %p111 = scmp.ne.s32.totalorder %s96, %s110
      %p112 = scmp.eq.s32.totalorder %s23, 0
      %p113 = por %p111, %p112
      %s115 = sadd.s32 %s114, 1
      %p118 = scmp.eq.s32.totalorder %s17, 1
      %p119 = scmp.ne.s32.totalorder %s114, %s116
      %p120 = scmp.eq.s32.totalorder %s17, 0
      %p121 = por %p119, %p120
      %p122 = scmp.ne.s32.totalorder %s114, %s116
      %p123 = scmp.eq.s32.totalorder %s22, 1
      %p124 = por %p122, %p123
      %p125 = scmp.ne.s32.totalorder %s116, %s117
      %p126 = scmp.eq.s32.totalorder %s22, 0
      %p127 = por %p125, %p126
      %p128 = scmp.ne.s32.totalorder %s116, %s117
      %p129 = scmp.eq.s32.totalorder %s23, 1
      %p130 = por %p128, %p129
      %p132 = scmp.ne.s32.totalorder %s117, %s131
      %p133 = scmp.eq.s32.totalorder %s23, 0
      %p134 = por %p132, %p133
      %s135 = ssub.s32 %s17, %s24
      %p136 = scmp.eq.s32.totalorder %s135, 0
      %s138 = sadd.s32 %s137, 1
      %s139 = scalar_select %p136, %s137, %s138
      %p142 = pneg %p136
      %p143 = scmp.eq.s32.totalorder %s17, 1
      %p144 = por %p142, %p143
      %p145 = scmp.ne.s32.totalorder %s137, %s140
      %p146 = scmp.eq.s32.totalorder %s17, 0
      %p147 = por %p145, %p146
      %p148 = scmp.ne.s32.totalorder %s137, %s140
      %p149 = scmp.eq.s32.totalorder %s22, 1
      %p150 = por %p148, %p149
      %p151 = scmp.ne.s32.totalorder %s140, %s141
      %p152 = scmp.eq.s32.totalorder %s22, 0
      %p153 = por %p151, %p152
      %p154 = scmp.ne.s32.totalorder %s140, %s141
      %p155 = scmp.eq.s32.totalorder %s23, 1
      %p156 = por %p154, %p155
      %p158 = scmp.ne.s32.totalorder %s141, %s157
      %p159 = scmp.eq.s32.totalorder %s23, 0
      %p160 = por %p158, %p159
      %p161 = scmp.le.s32.totalorder 1, %s17
      %p162 = scmp.lt.s32.totalorder %s17, 3
      %p163 = pnand %p161, %p162
      %p164 = pneg %p163
      // Predicated region
      $region9: #{tpu_custom_call.1} parent=5 // pred_check
        _
      $region10: #{tpu_custom_call.1} parent=5 // pred_check_branch
        %166 = sbr.rel (%p163) target = $region12
      $region11: #{tpu_custom_call.1} parent=5 // pred_region
        %s167 = ssub.s32 %s17, 1
        // Predicated region
        $region13: #{tpu_custom_call.1} parent=11 // pred_check
          %p168 = pneg %p64
        $region14: #{tpu_custom_call.1} parent=11 // pred_check_branch
          %170 = sbr.rel (%p168) target = $region16
        $region15: #{tpu_custom_call.1} parent=11 // pred_region
          _
        $region16: #{tpu_custom_call.1} parent=11 // pred_fallthru
          _
        // Predicated region
        $region17: #{tpu_custom_call.1} parent=11 // pred_check
          %p171 = pneg %p85
        $region18: #{tpu_custom_call.1} parent=11 // pred_check_branch
          %173 = sbr.rel (%p171) target = $region20
        $region19: #{tpu_custom_call.1} parent=11 // pred_region
          _
        $region20: #{tpu_custom_call.1} parent=11 // pred_fallthru
          _
        // Predicated region
        $region21: #{tpu_custom_call.1} parent=11 // pred_check
          %p174 = pneg %p106
        $region22: #{tpu_custom_call.1} parent=11 // pred_check_branch
          %176 = sbr.rel (%p174) target = $region24
        $region23: #{tpu_custom_call.1} parent=11 // pred_region
          _
        $region24: #{tpu_custom_call.1} parent=11 // pred_fallthru
          _
        // Predicated region
        $region25: #{tpu_custom_call.1} parent=11 // pred_check
          %p177 = pneg %p127
        $region26: #{tpu_custom_call.1} parent=11 // pred_check_branch
          %179 = sbr.rel (%p177) target = $region28
        $region27: #{tpu_custom_call.1} parent=11 // pred_region
          _
        $region28: #{tpu_custom_call.1} parent=11 // pred_fallthru
          _
      $region12: #{tpu_custom_call.1} parent=5 // pred_fallthru
        _
      %p180 = scmp.lt.s32.totalorder %s17, 2
      // Predicated region
      $region29: #{tpu_custom_call.1} parent=5 // pred_check
        %p181 = pneg %p180
      $region30: #{tpu_custom_call.1} parent=5 // pred_check_branch
        %183 = sbr.rel (%p181) target = $region32
      $region31: #{tpu_custom_call.1} parent=5 // pred_region
        // Predicated region
        $region33: #{tpu_custom_call.1} parent=31 // pred_check
          %p184 = pneg %p37
        $region34: #{tpu_custom_call.1} parent=31 // pred_check_branch
          %186 = sbr.rel (%p184) target = $region36
        $region35: #{tpu_custom_call.1} parent=31 // pred_region
          %s187 = sand.u32 %s27, 1
          %s188 = scalar_lea.sflag [#allocation3], %s187
          %s189 = sand.u32 %s27, 1
          %s190 = smul.addr %s189, 64
          %s191 = scalar_lea.vmem [#allocation2], %s190
          %s192 = smul.u32 8, %s17
          %194 = vsyncadd %s188, 0
          %s195 = smul.addr %s192, 8
          %s196 = scalar_lea.hbm %s0, %s195
          %s198 = sshll.u32 %s196, 4
          %s199 = int_to_ptr.hbm [resolvable:$true] %s198
          %s200 = sshll.u32 %s191, 4
          %s201 = int_to_ptr.vmem [resolvable:$true] %s200
          %203 = dma.hbm_to_vmem [thread:$0]  %s199, 1024, %s201, %s188
        $region36: #{tpu_custom_call.1} parent=31 // pred_fallthru
          _
      $region32: #{tpu_custom_call.1} parent=5 // pred_fallthru
        _
      %p204 = scmp.le.s32.totalorder 1, %s17
      %p205 = scmp.lt.s32.totalorder %s17, 3
      %p206 = pnand %p204, %p205
      %p207 = pneg %p206
      // Predicated region
      $region37: #{tpu_custom_call.1} parent=5 // pred_check
        _
      $region38: #{tpu_custom_call.1} parent=5 // pred_check_branch
        %209 = sbr.rel (%p206) target = $region40
      $region39: #{tpu_custom_call.1} parent=5 // pred_region
        %s210 = ssub.s32 %s17, 1
        %s211 = sand.u32 %s30, 1
        %s212 = scalar_lea.sflag [#allocation3], %s211
        %s213 = sand.u32 %s30, 1
        %s214 = smul.addr %s213, 64
        %s215 = scalar_lea.vmem [#allocation2], %s214
        // Predicated region
        $region41: #{tpu_custom_call.1} parent=39 // pred_check
          %p216 = pneg %p43
        $region42: #{tpu_custom_call.1} parent=39 // pred_check_branch
          %218 = sbr.rel (%p216) target = $region44
        $region43: #{tpu_custom_call.1} parent=39 // pred_region
          %220 = dma.done %s212, 1024
        $region44: #{tpu_custom_call.1} parent=39 // pred_fallthru
          _
        %s221 = sand.u32 %s30, 1
        %s222 = scalar_lea.sflag [#allocation3], %s221
        %s223 = sand.u32 %s30, 1
        %s224 = smul.addr %s223, 64
        %s225 = scalar_lea.vmem [#allocation2], %s224
        %p226 = pneg %p43
        %p227 = pneg %p40
        %p228 = pneg %p64
        %p229 = pneg %p61
        %p230 = pneg %p85
        %p231 = pneg %p82
        %p232 = pneg %p106
        %p233 = pneg %p103
        %p234 = pneg %p127
        %p235 = pneg %p124
        %p236 = pneg %p153
        %p237 = pneg %p150
        %s238 = sand.u32 %s140, 1
        %s239 = scalar_lea.sflag [#allocation4], %s238
        %s240 = sand.u32 %s140, 1
        %s241 = smul.addr %s240, 128
        %s242 = scalar_lea.vmem [#allocation5], %s241
        %s243 = smul.u32 8, %s22
        %s244 = smul.u32 8, %s22
        %v245 = vld [vmem:[%s1] sm:$0xff]
        %v246 = vld [vmem:[%s1 + $0x8] sm:$0xff]
        %v247 = vld [vmem:[%s1 + $0x10] sm:$0xff]
        %v248 = vld [vmem:[%s1 + $0x18] sm:$0xff]
        %v249 = vld [vmem:[%s215] sm:$0xff]
        %v250 = vld [vmem:[%s215 + $0x8] sm:$0xff]
        %v251 = vld [vmem:[%s215 + $0x10] sm:$0xff]
        %v252 = vld [vmem:[%s215 + $0x18] sm:$0xff]
        %v253 = vld [vmem:[%s215 + $0x20] sm:$0xff]
        %v254 = vld [vmem:[%s215 + $0x28] sm:$0xff]
        %v255 = vld [vmem:[%s215 + $0x30] sm:$0xff]
        %v256 = vld [vmem:[%s215 + $0x38] sm:$0xff]
        %v257 = vld [vmem:[%s2] sm:$0xff]
        %v258 = vld [vmem:[%s2 + $0x8] sm:$0xff]
        %v259 = vld [vmem:[%s2 + $0x10] sm:$0xff]
        %v260 = vld [vmem:[%s2 + $0x18] sm:$0xff]
        %262 = vset.pattern.permute.xlu0 0
        %263 = vperm.xlu0 %262, %v257
        %v264 = vpop.permute.xlu0 %263
        %267 = vset.pattern.permute.xlu0 0
        %268 = vperm.xlu0 %267, %v258
        %v269 = vpop.permute.xlu0 %268
        %272 = vset.pattern.permute.xlu0 0
        %273 = vperm.xlu0 %272, %v259
        %v274 = vpop.permute.xlu0 %273
        %277 = vset.pattern.permute.xlu0 0
        %278 = vperm.xlu0 %277, %v260
        %v279 = vpop.permute.xlu0 %278
        %vm281 = vcmask 64512
        %v283 = vsel %vm281, %v245, 0
        %v286 = vsel %vm281, %v246, 0
        %v289 = vsel %vm281, %v247, 0
        %v292 = vsel %vm281, %v248, 0
        %294 = vmatpush.msra.mxu0 0.0
        %295 = vmatpush.msra.mxu0 0.0
        %296 = vmatpush.msra.mxu0 0.0
        %297 = vmatpush.msra.mxu0 0.0
        %298 = vmatpush.msra.mxu0 0.0
        %299 = vmatpush.msra.mxu0 0.0
        %300 = vmatpush.msra.mxu0 0.0
        %301 = vmatpush.msra.mxu0 0.0
        %302 = vmatpush.msra.mxu0 0.0
        %303 = vmatpush.msra.mxu0 0.0
        %304 = vmatpush.msra.mxu0 0.0
        %305 = vmatpush.msra.mxu0 0.0
        %306 = vmatpush.msra.mxu0 0.0
        %307 = vmatpush.msra.mxu0 0.0
        %308 = vmatpush.msra.mxu0 0.0
        %309 = vmatpush.msra.mxu0 %v249
        %310 = vmatmul.f32.gmra.mxu0 %v283
        %v311 = vpop.f32.mrf.mxu0
        %v312 = vadd.f32 %v264, %v311
        %313 = vmatmul.f32.gmra.mxu0 %v286
        %v314 = vpop.f32.mrf.mxu0
        %v315 = vadd.f32 %v269, %v314
        %316 = vmatmul.f32.gmra.mxu0 %v289
        %v317 = vpop.f32.mrf.mxu0
        %v318 = vadd.f32 %v274, %v317
        %319 = vmatmul.f32.gmra.mxu0 %v292
        %v320 = vpop.f32.mrf.mxu0
        %v321 = vadd.f32 %v279, %v320
        %322 = vdwg.mxu0
        %323 = vmatpush.msra.mxu0 0.0
        %324 = vmatpush.msra.mxu0 0.0
        %325 = vmatpush.msra.mxu0 0.0
        %326 = vmatpush.msra.mxu0 0.0
        %327 = vmatpush.msra.mxu0 0.0
        %328 = vmatpush.msra.mxu0 0.0
        %329 = vmatpush.msra.mxu0 0.0
        %330 = vmatpush.msra.mxu0 0.0
        %331 = vmatpush.msra.mxu0 0.0
        %332 = vmatpush.msra.mxu0 0.0
        %333 = vmatpush.msra.mxu0 0.0
        %334 = vmatpush.msra.mxu0 0.0
        %335 = vmatpush.msra.mxu0 0.0
        %336 = vmatpush.msra.mxu0 0.0
        %337 = vmatpush.msra.mxu0 0.0
        %338 = vmatpush.msra.mxu0 %v250
        %339 = vmatmul.f32.gmra.mxu0 %v283
        %v340 = vpop.f32.mrf.mxu0
        %v341 = vadd.f32 %v264, %v340
        %342 = vmatmul.f32.gmra.mxu0 %v286
        %v343 = vpop.f32.mrf.mxu0
        %v344 = vadd.f32 %v269, %v343
        %345 = vmatmul.f32.gmra.mxu0 %v289
        %v346 = vpop.f32.mrf.mxu0
        %v347 = vadd.f32 %v274, %v346
        %348 = vmatmul.f32.gmra.mxu0 %v292
        %v349 = vpop.f32.mrf.mxu0
        %v350 = vadd.f32 %v279, %v349
        %351 = vdwg.mxu0
        %352 = vmatpush.msra.mxu0 0.0
        %353 = vmatpush.msra.mxu0 0.0
        %354 = vmatpush.msra.mxu0 0.0
        %355 = vmatpush.msra.mxu0 0.0
        %356 = vmatpush.msra.mxu0 0.0
        %357 = vmatpush.msra.mxu0 0.0
        %358 = vmatpush.msra.mxu0 0.0
        %359 = vmatpush.msra.mxu0 0.0
        %360 = vmatpush.msra.mxu0 0.0
        %361 = vmatpush.msra.mxu0 0.0
        %362 = vmatpush.msra.mxu0 0.0
        %363 = vmatpush.msra.mxu0 0.0
        %364 = vmatpush.msra.mxu0 0.0
        %365 = vmatpush.msra.mxu0 0.0
        %366 = vmatpush.msra.mxu0 0.0
        %367 = vmatpush.msra.mxu0 %v251
        %368 = vmatmul.f32.gmra.mxu0 %v283
        %v369 = vpop.f32.mrf.mxu0
        %v370 = vadd.f32 %v264, %v369
        %371 = vmatmul.f32.gmra.mxu0 %v286
        %v372 = vpop.f32.mrf.mxu0
        %v373 = vadd.f32 %v269, %v372
        %374 = vmatmul.f32.gmra.mxu0 %v289
        %v375 = vpop.f32.mrf.mxu0
        %v376 = vadd.f32 %v274, %v375
        %377 = vmatmul.f32.gmra.mxu0 %v292
        %v378 = vpop.f32.mrf.mxu0
        %v379 = vadd.f32 %v279, %v378
        %380 = vdwg.mxu0
        %381 = vmatpush.msra.mxu0 0.0
        %382 = vmatpush.msra.mxu0 0.0
        %383 = vmatpush.msra.mxu0 0.0
        %384 = vmatpush.msra.mxu0 0.0
        %385 = vmatpush.msra.mxu0 0.0
        %386 = vmatpush.msra.mxu0 0.0
        %387 = vmatpush.msra.mxu0 0.0
        %388 = vmatpush.msra.mxu0 0.0
        %389 = vmatpush.msra.mxu0 0.0
        %390 = vmatpush.msra.mxu0 0.0
        %391 = vmatpush.msra.mxu0 0.0
        %392 = vmatpush.msra.mxu0 0.0
        %393 = vmatpush.msra.mxu0 0.0
        %394 = vmatpush.msra.mxu0 0.0
        %395 = vmatpush.msra.mxu0 0.0
        %396 = vmatpush.msra.mxu0 %v252
        %397 = vmatmul.f32.gmra.mxu0 %v283
        %v398 = vpop.f32.mrf.mxu0
        %v399 = vadd.f32 %v264, %v398
        %400 = vmatmul.f32.gmra.mxu0 %v286
        %v401 = vpop.f32.mrf.mxu0
        %v402 = vadd.f32 %v269, %v401
        %403 = vmatmul.f32.gmra.mxu0 %v289
        %v404 = vpop.f32.mrf.mxu0
        %v405 = vadd.f32 %v274, %v404
        %406 = vmatmul.f32.gmra.mxu0 %v292
        %v407 = vpop.f32.mrf.mxu0
        %v408 = vadd.f32 %v279, %v407
        %409 = vdwg.mxu0
        %410 = vmatpush.msra.mxu0 0.0
        %411 = vmatpush.msra.mxu0 0.0
        %412 = vmatpush.msra.mxu0 0.0
        %413 = vmatpush.msra.mxu0 0.0
        %414 = vmatpush.msra.mxu0 0.0
        %415 = vmatpush.msra.mxu0 0.0
        %416 = vmatpush.msra.mxu0 0.0
        %417 = vmatpush.msra.mxu0 0.0
        %418 = vmatpush.msra.mxu0 0.0
        %419 = vmatpush.msra.mxu0 0.0
        %420 = vmatpush.msra.mxu0 0.0
        %421 = vmatpush.msra.mxu0 0.0
        %422 = vmatpush.msra.mxu0 0.0
        %423 = vmatpush.msra.mxu0 0.0
        %424 = vmatpush.msra.mxu0 0.0
        %425 = vmatpush.msra.mxu0 %v253
        %426 = vmatmul.f32.gmra.mxu0 %v283
        %v427 = vpop.f32.mrf.mxu0
        %v428 = vadd.f32 %v264, %v427
        %429 = vmatmul.f32.gmra.mxu0 %v286
        %v430 = vpop.f32.mrf.mxu0
        %v431 = vadd.f32 %v269, %v430
        %432 = vmatmul.f32.gmra.mxu0 %v289
        %v433 = vpop.f32.mrf.mxu0
        %v434 = vadd.f32 %v274, %v433
        %435 = vmatmul.f32.gmra.mxu0 %v292
        %v436 = vpop.f32.mrf.mxu0
        %v437 = vadd.f32 %v279, %v436
        %438 = vdwg.mxu0
        %439 = vmatpush.msra.mxu0 0.0
        %440 = vmatpush.msra.mxu0 0.0
        %441 = vmatpush.msra.mxu0 0.0
        %442 = vmatpush.msra.mxu0 0.0
        %443 = vmatpush.msra.mxu0 0.0
        %444 = vmatpush.msra.mxu0 0.0
        %445 = vmatpush.msra.mxu0 0.0
        %446 = vmatpush.msra.mxu0 0.0
        %447 = vmatpush.msra.mxu0 0.0
        %448 = vmatpush.msra.mxu0 0.0
        %449 = vmatpush.msra.mxu0 0.0
        %450 = vmatpush.msra.mxu0 0.0
        %451 = vmatpush.msra.mxu0 0.0
        %452 = vmatpush.msra.mxu0 0.0
        %453 = vmatpush.msra.mxu0 0.0
        %454 = vmatpush.msra.mxu0 %v254
        %455 = vmatmul.f32.gmra.mxu0 %v283
        %v456 = vpop.f32.mrf.mxu0
        %v457 = vadd.f32 %v264, %v456
        %458 = vmatmul.f32.gmra.mxu0 %v286
        %v459 = vpop.f32.mrf.mxu0
        %v460 = vadd.f32 %v269, %v459
        %461 = vmatmul.f32.gmra.mxu0 %v289
        %v462 = vpop.f32.mrf.mxu0
        %v463 = vadd.f32 %v274, %v462
        %464 = vmatmul.f32.gmra.mxu0 %v292
        %v465 = vpop.f32.mrf.mxu0
        %v466 = vadd.f32 %v279, %v465
        %467 = vdwg.mxu0
        %468 = vmatpush.msra.mxu0 0.0
        %469 = vmatpush.msra.mxu0 0.0
        %470 = vmatpush.msra.mxu0 0.0
        %471 = vmatpush.msra.mxu0 0.0
        %472 = vmatpush.msra.mxu0 0.0
        %473 = vmatpush.msra.mxu0 0.0
        %474 = vmatpush.msra.mxu0 0.0
        %475 = vmatpush.msra.mxu0 0.0
        %476 = vmatpush.msra.mxu0 0.0
        %477 = vmatpush.msra.mxu0 0.0
        %478 = vmatpush.msra.mxu0 0.0
        %479 = vmatpush.msra.mxu0 0.0
        %480 = vmatpush.msra.mxu0 0.0
        %481 = vmatpush.msra.mxu0 0.0
        %482 = vmatpush.msra.mxu0 0.0
        %483 = vmatpush.msra.mxu0 %v255
        %484 = vmatmul.f32.gmra.mxu0 %v283
        %v485 = vpop.f32.mrf.mxu0
        %v486 = vadd.f32 %v264, %v485
        %487 = vmatmul.f32.gmra.mxu0 %v286
        %v488 = vpop.f32.mrf.mxu0
        %v489 = vadd.f32 %v269, %v488
        %490 = vmatmul.f32.gmra.mxu0 %v289
        %v491 = vpop.f32.mrf.mxu0
        %v492 = vadd.f32 %v274, %v491
        %493 = vmatmul.f32.gmra.mxu0 %v292
        %v494 = vpop.f32.mrf.mxu0
        %v495 = vadd.f32 %v279, %v494
        %496 = vdwg.mxu0
        %497 = vmatpush.msra.mxu0 0.0
        %498 = vmatpush.msra.mxu0 0.0
        %499 = vmatpush.msra.mxu0 0.0
        %500 = vmatpush.msra.mxu0 0.0
        %501 = vmatpush.msra.mxu0 0.0
        %502 = vmatpush.msra.mxu0 0.0
        %503 = vmatpush.msra.mxu0 0.0
        %504 = vmatpush.msra.mxu0 0.0
        %505 = vmatpush.msra.mxu0 0.0
        %506 = vmatpush.msra.mxu0 0.0
        %507 = vmatpush.msra.mxu0 0.0
        %508 = vmatpush.msra.mxu0 0.0
        %509 = vmatpush.msra.mxu0 0.0
        %510 = vmatpush.msra.mxu0 0.0
        %511 = vmatpush.msra.mxu0 0.0
        %512 = vmatpush.msra.mxu0 %v256
        %513 = vmatmul.f32.gmra.mxu0 %v283
        %v514 = vpop.f32.mrf.mxu0
        %v515 = vadd.f32 %v264, %v514
        %516 = vmatmul.f32.gmra.mxu0 %v286
        %v517 = vpop.f32.mrf.mxu0
        %v518 = vadd.f32 %v269, %v517
        %519 = vmatmul.f32.gmra.mxu0 %v289
        %v520 = vpop.f32.mrf.mxu0
        %v521 = vadd.f32 %v274, %v520
        %522 = vmatmul.f32.gmra.mxu0 %v292
        %v523 = vpop.f32.mrf.mxu0
        %v524 = vadd.f32 %v279, %v523
        %525 = vdwg.mxu0
        %v526 = vmax.f32 %v312, 0.0
        %v527 = vmax.f32 %v341, 0.0
        %v528 = vmax.f32 %v370, 0.0
        %v529 = vmax.f32 %v399, 0.0
        %v530 = vmax.f32 %v428, 0.0
        %v531 = vmax.f32 %v457, 0.0
        %v532 = vmax.f32 %v486, 0.0
        %v533 = vmax.f32 %v515, 0.0
        %v534 = vmax.f32 %v315, 0.0
        %v535 = vmax.f32 %v344, 0.0
        %v536 = vmax.f32 %v373, 0.0
        %v537 = vmax.f32 %v402, 0.0
        %v538 = vmax.f32 %v431, 0.0
        %v539 = vmax.f32 %v460, 0.0
        %v540 = vmax.f32 %v489, 0.0
        %v541 = vmax.f32 %v518, 0.0
        %v542 = vmax.f32 %v318, 0.0
        %v543 = vmax.f32 %v347, 0.0
        %v544 = vmax.f32 %v376, 0.0
        %v545 = vmax.f32 %v405, 0.0
        %v546 = vmax.f32 %v434, 0.0
        %v547 = vmax.f32 %v463, 0.0
        %v548 = vmax.f32 %v492, 0.0
        %v549 = vmax.f32 %v521, 0.0
        %v550 = vmax.f32 %v321, 0.0
        %v551 = vmax.f32 %v350, 0.0
        %v552 = vmax.f32 %v379, 0.0
        %v553 = vmax.f32 %v408, 0.0
        %v554 = vmax.f32 %v437, 0.0
        %v555 = vmax.f32 %v466, 0.0
        %v556 = vmax.f32 %v495, 0.0
        %v557 = vmax.f32 %v524, 0.0
        %v558 = vld [vmem:[%s3] sm:$0xff]
        %v559 = vld [vmem:[%s3 + $0x8] sm:$0xff]
        %v560 = vld [vmem:[%s4] sm:$0xff]
        %v561 = vld [vmem:[%s4 + $0x8] sm:$0xff]
        %563 = vset.pattern.permute.xlu0 0
        %564 = vperm.xlu0 %563, %v560
        %v565 = vpop.permute.xlu0 %564
        %568 = vset.pattern.permute.xlu0 0
        %569 = vperm.xlu0 %568, %v561
        %v570 = vpop.permute.xlu0 %569
        %vm572 = vcmask 261120
        %v574 = vsel %vm572, %v558, 0
        %v577 = vsel %vm572, %v559, 0
        %579 = vmatpush.msra.mxu0 0.0
        %580 = vmatpush.msra.mxu0 0.0
        %581 = vmatpush.msra.mxu0 0.0
        %582 = vmatpush.msra.mxu0 0.0
        %583 = vmatpush.msra.mxu0 0.0
        %584 = vmatpush.msra.mxu0 0.0
        %585 = vmatpush.msra.mxu0 0.0
        %586 = vmatpush.msra.mxu0 0.0
        %587 = vmatpush.msra.mxu0 0.0
        %588 = vmatpush.msra.mxu0 0.0
        %589 = vmatpush.msra.mxu0 0.0
        %590 = vmatpush.msra.mxu0 0.0
        %591 = vmatpush.msra.mxu0 %v550
        %592 = vmatpush.msra.mxu0 %v542
        %593 = vmatpush.msra.mxu0 %v534
        %594 = vmatpush.msra.mxu0 %v526
        %595 = vmatmul.f32.gmra.mxu0 %v574
        %v596 = vpop.f32.mrf.mxu0
        %v597 = vadd.f32 %v565, %v596
        %598 = vmatmul.f32.gmra.mxu0 %v577
        %v599 = vpop.f32.mrf.mxu0
        %v600 = vadd.f32 %v570, %v599
        %601 = vdwg.mxu0
        %602 = vmatpush.msra.mxu0 0.0
        %603 = vmatpush.msra.mxu0 0.0
        %604 = vmatpush.msra.mxu0 0.0
        %605 = vmatpush.msra.mxu0 0.0
        %606 = vmatpush.msra.mxu0 0.0
        %607 = vmatpush.msra.mxu0 0.0
        %608 = vmatpush.msra.mxu0 0.0
        %609 = vmatpush.msra.mxu0 0.0
        %610 = vmatpush.msra.mxu0 0.0
        %611 = vmatpush.msra.mxu0 0.0
        %612 = vmatpush.msra.mxu0 0.0
        %613 = vmatpush.msra.mxu0 0.0
        %614 = vmatpush.msra.mxu0 %v551
        %615 = vmatpush.msra.mxu0 %v543
        %616 = vmatpush.msra.mxu0 %v535
        %617 = vmatpush.msra.mxu0 %v527
        %618 = vmatmul.f32.gmra.mxu0 %v574
        %v619 = vpop.f32.mrf.mxu0
        %v620 = vadd.f32 %v565, %v619
        %621 = vmatmul.f32.gmra.mxu0 %v577
        %v622 = vpop.f32.mrf.mxu0
        %v623 = vadd.f32 %v570, %v622
        %624 = vdwg.mxu0
        %625 = vmatpush.msra.mxu0 0.0
        %626 = vmatpush.msra.mxu0 0.0
        %627 = vmatpush.msra.mxu0 0.0
        %628 = vmatpush.msra.mxu0 0.0
        %629 = vmatpush.msra.mxu0 0.0
        %630 = vmatpush.msra.mxu0 0.0
        %631 = vmatpush.msra.mxu0 0.0
        %632 = vmatpush.msra.mxu0 0.0
        %633 = vmatpush.msra.mxu0 0.0
        %634 = vmatpush.msra.mxu0 0.0
        %635 = vmatpush.msra.mxu0 0.0
        %636 = vmatpush.msra.mxu0 0.0
        %637 = vmatpush.msra.mxu0 %v552
        %638 = vmatpush.msra.mxu0 %v544
        %639 = vmatpush.msra.mxu0 %v536
        %640 = vmatpush.msra.mxu0 %v528
        %641 = vmatmul.f32.gmra.mxu0 %v574
        %v642 = vpop.f32.mrf.mxu0
        %v643 = vadd.f32 %v565, %v642
        %644 = vmatmul.f32.gmra.mxu0 %v577
        %v645 = vpop.f32.mrf.mxu0
        %v646 = vadd.f32 %v570, %v645
        %647 = vdwg.mxu0
        %648 = vmatpush.msra.mxu0 0.0
        %649 = vmatpush.msra.mxu0 0.0
        %650 = vmatpush.msra.mxu0 0.0
        %651 = vmatpush.msra.mxu0 0.0
        %652 = vmatpush.msra.mxu0 0.0
        %653 = vmatpush.msra.mxu0 0.0
        %654 = vmatpush.msra.mxu0 0.0
        %655 = vmatpush.msra.mxu0 0.0
        %656 = vmatpush.msra.mxu0 0.0
        %657 = vmatpush.msra.mxu0 0.0
        %658 = vmatpush.msra.mxu0 0.0
        %659 = vmatpush.msra.mxu0 0.0
        %660 = vmatpush.msra.mxu0 %v553
        %661 = vmatpush.msra.mxu0 %v545
        %662 = vmatpush.msra.mxu0 %v537
        %663 = vmatpush.msra.mxu0 %v529
        %664 = vmatmul.f32.gmra.mxu0 %v574
        %v665 = vpop.f32.mrf.mxu0
        %v666 = vadd.f32 %v565, %v665
        %667 = vmatmul.f32.gmra.mxu0 %v577
        %v668 = vpop.f32.mrf.mxu0
        %v669 = vadd.f32 %v570, %v668
        %670 = vdwg.mxu0
        %671 = vmatpush.msra.mxu0 0.0
        %672 = vmatpush.msra.mxu0 0.0
        %673 = vmatpush.msra.mxu0 0.0
        %674 = vmatpush.msra.mxu0 0.0
        %675 = vmatpush.msra.mxu0 0.0
        %676 = vmatpush.msra.mxu0 0.0
        %677 = vmatpush.msra.mxu0 0.0
        %678 = vmatpush.msra.mxu0 0.0
        %679 = vmatpush.msra.mxu0 0.0
        %680 = vmatpush.msra.mxu0 0.0
        %681 = vmatpush.msra.mxu0 0.0
        %682 = vmatpush.msra.mxu0 0.0
        %683 = vmatpush.msra.mxu0 %v554
        %684 = vmatpush.msra.mxu0 %v546
        %685 = vmatpush.msra.mxu0 %v538
        %686 = vmatpush.msra.mxu0 %v530
        %687 = vmatmul.f32.gmra.mxu0 %v574
        %v688 = vpop.f32.mrf.mxu0
        %v689 = vadd.f32 %v565, %v688
        %690 = vmatmul.f32.gmra.mxu0 %v577
        %v691 = vpop.f32.mrf.mxu0
        %v692 = vadd.f32 %v570, %v691
        %693 = vdwg.mxu0
        %694 = vmatpush.msra.mxu0 0.0
        %695 = vmatpush.msra.mxu0 0.0
        %696 = vmatpush.msra.mxu0 0.0
        %697 = vmatpush.msra.mxu0 0.0
        %698 = vmatpush.msra.mxu0 0.0
        %699 = vmatpush.msra.mxu0 0.0
        %700 = vmatpush.msra.mxu0 0.0
        %701 = vmatpush.msra.mxu0 0.0
        %702 = vmatpush.msra.mxu0 0.0
        %703 = vmatpush.msra.mxu0 0.0
        %704 = vmatpush.msra.mxu0 0.0
        %705 = vmatpush.msra.mxu0 0.0
        %706 = vmatpush.msra.mxu0 %v555
        %707 = vmatpush.msra.mxu0 %v547
        %708 = vmatpush.msra.mxu0 %v539
        %709 = vmatpush.msra.mxu0 %v531
        %710 = vmatmul.f32.gmra.mxu0 %v574
        %v711 = vpop.f32.mrf.mxu0
        %v712 = vadd.f32 %v565, %v711
        %713 = vmatmul.f32.gmra.mxu0 %v577
        %v714 = vpop.f32.mrf.mxu0
        %v715 = vadd.f32 %v570, %v714
        %716 = vdwg.mxu0
        %717 = vmatpush.msra.mxu0 0.0
        %718 = vmatpush.msra.mxu0 0.0
        %719 = vmatpush.msra.mxu0 0.0
        %720 = vmatpush.msra.mxu0 0.0
        %721 = vmatpush.msra.mxu0 0.0
        %722 = vmatpush.msra.mxu0 0.0
        %723 = vmatpush.msra.mxu0 0.0
        %724 = vmatpush.msra.mxu0 0.0
        %725 = vmatpush.msra.mxu0 0.0
        %726 = vmatpush.msra.mxu0 0.0
        %727 = vmatpush.msra.mxu0 0.0
        %728 = vmatpush.msra.mxu0 0.0
        %729 = vmatpush.msra.mxu0 %v556
        %730 = vmatpush.msra.mxu0 %v548
        %731 = vmatpush.msra.mxu0 %v540
        %732 = vmatpush.msra.mxu0 %v532
        %733 = vmatmul.f32.gmra.mxu0 %v574
        %v734 = vpop.f32.mrf.mxu0
        %v735 = vadd.f32 %v565, %v734
        %736 = vmatmul.f32.gmra.mxu0 %v577
        %v737 = vpop.f32.mrf.mxu0
        %v738 = vadd.f32 %v570, %v737
        %739 = vdwg.mxu0
        %740 = vmatpush.msra.mxu0 0.0
        %741 = vmatpush.msra.mxu0 0.0
        %742 = vmatpush.msra.mxu0 0.0
        %743 = vmatpush.msra.mxu0 0.0
        %744 = vmatpush.msra.mxu0 0.0
        %745 = vmatpush.msra.mxu0 0.0
        %746 = vmatpush.msra.mxu0 0.0
        %747 = vmatpush.msra.mxu0 0.0
        %748 = vmatpush.msra.mxu0 0.0
        %749 = vmatpush.msra.mxu0 0.0
        %750 = vmatpush.msra.mxu0 0.0
        %751 = vmatpush.msra.mxu0 0.0
        %752 = vmatpush.msra.mxu0 %v557
        %753 = vmatpush.msra.mxu0 %v549
        %754 = vmatpush.msra.mxu0 %v541
        %755 = vmatpush.msra.mxu0 %v533
        %756 = vmatmul.f32.gmra.mxu0 %v574
        %v757 = vpop.f32.mrf.mxu0
        %v758 = vadd.f32 %v565, %v757
        %759 = vmatmul.f32.gmra.mxu0 %v577
        %v760 = vpop.f32.mrf.mxu0
        %v761 = vadd.f32 %v570, %v760
        %762 = vdwg.mxu0
        %763 = vst [vmem:[%s242] sm:$0xff] %v597
        %764 = vst [vmem:[%s242 + $0x8] sm:$0xff] %v620
        %765 = vst [vmem:[%s242 + $0x10] sm:$0xff] %v643
        %766 = vst [vmem:[%s242 + $0x18] sm:$0xff] %v666
        %767 = vst [vmem:[%s242 + $0x20] sm:$0xff] %v689
        %768 = vst [vmem:[%s242 + $0x28] sm:$0xff] %v712
        %769 = vst [vmem:[%s242 + $0x30] sm:$0xff] %v735
        %770 = vst [vmem:[%s242 + $0x38] sm:$0xff] %v758
        %771 = vst [vmem:[%s242 + $0x40] sm:$0xff] %v600
        %772 = vst [vmem:[%s242 + $0x48] sm:$0xff] %v623
        %773 = vst [vmem:[%s242 + $0x50] sm:$0xff] %v646
        %774 = vst [vmem:[%s242 + $0x58] sm:$0xff] %v669
        %775 = vst [vmem:[%s242 + $0x60] sm:$0xff] %v692
        %776 = vst [vmem:[%s242 + $0x68] sm:$0xff] %v715
        %777 = vst [vmem:[%s242 + $0x70] sm:$0xff] %v738
        %778 = vst [vmem:[%s242 + $0x78] sm:$0xff] %v761
        %s779 = sand.u32 %s140, 1
        %s780 = scalar_lea.sflag [#allocation4], %s779
        %s781 = sand.u32 %s140, 1
        %s782 = smul.addr %s781, 128
        %s783 = scalar_lea.vmem [#allocation5], %s782
        // Predicated region
        $region45: #{tpu_custom_call.1} parent=39 // pred_check
          %p784 = pneg %p150
        $region46: #{tpu_custom_call.1} parent=39 // pred_check_branch
          %786 = sbr.rel (%p784) target = $region48
        $region47: #{tpu_custom_call.1} parent=39 // pred_region
          %s787 = smul.u32 8, %s22
          %789 = vsyncadd %s780, 0
          %s790 = smul.addr %s787, 8
          %s791 = scalar_lea.hbm %s5, %s790
          %s792 = sshll.u32 %s783, 4
          %s793 = int_to_ptr.vmem [resolvable:$true] %s792
          %s794 = sshll.u32 %s791, 4
          %s795 = int_to_ptr.hbm [resolvable:$true] %s794
          %800 = dma.vmem_to_hbm [thread:$0]  %s793, 2048, %s795, %s780, 1024, 2048, 64
        $region48: #{tpu_custom_call.1} parent=39 // pred_fallthru
          _
      $region40: #{tpu_custom_call.1} parent=5 // pred_fallthru
        _
      %p801 = scmp.le.s32.totalorder 2, %s17
      // Predicated region
      $region49: #{tpu_custom_call.1} parent=5 // pred_check
        %p802 = pneg %p801
      $region50: #{tpu_custom_call.1} parent=5 // pred_check_branch
        %804 = sbr.rel (%p802) target = $region52
      $region51: #{tpu_custom_call.1} parent=5 // pred_region
        %s805 = ssub.s32 %s17, 2
        // Predicated region
        $region53: #{tpu_custom_call.1} parent=51 // pred_check
          %p806 = pneg %p156
        $region54: #{tpu_custom_call.1} parent=51 // pred_check_branch
          %808 = sbr.rel (%p806) target = $region56
        $region55: #{tpu_custom_call.1} parent=51 // pred_region
          %s809 = sand.u32 %s141, 1
          %s810 = scalar_lea.sflag [#allocation4], %s809
          %s811 = sand.u32 %s141, 1
          %s812 = smul.addr %s811, 128
          %s813 = scalar_lea.vmem [#allocation5], %s812
          %815 = dma.done %s810, 2048
        $region56: #{tpu_custom_call.1} parent=51 // pred_fallthru
          _
      $region52: #{tpu_custom_call.1} parent=5 // pred_fallthru
        _
    $region6: #{tpu_custom_call.1} parent=1 // loop_footer
      %s21 = sadd.s32 1, %s17
    $region7: #{tpu_custom_call.1} parent=1 // loop_footer_branch
      %16 = sbr.rel target = $region3
    $region8: #{tpu_custom_call.1} parent=1 // loop_exit
      _
    %816 = vsyncpa [#allocation3], 1
    %s817 = scalar_lea.sflag [#allocation3], 1
    %818 = vsyncpa %s817, 1
    %819 = vsyncpa [#allocation4], 1
    %s820 = scalar_lea.sflag [#allocation4], 1
    %821 = vsyncpa %s820, 1

</llo_original>
